<compile_context>
chip_gen: v7x
topology: tpu7x:2x2x1
jax: 0.10.0
libtpu: 0.0.40
codegen_flags: <defaults>
</compile_context>

<pallas_src>
import math

import jax
import jax.numpy as jnp
from jax.experimental import pallas as pl
from jax.experimental.pallas import tpu as pltpu


def _round_up(x: int, m: int) -> int:
    return ((x + m - 1) // m) * m


def _cdiv(a: int, b: int) -> int:
    return -(-a // b)


# ----------------------------------------------------------------------------
# Kernels
# ----------------------------------------------------------------------------
def _linear_resident_kernel(x_ref, w_ref, b_ref, o_ref):
    # One (tn, L_pad) output tile; W^T is fully VMEM-resident (constant block
    # index -> DMA'd once).  The .astype is a no-op when x is bf16; when x is
    # f32 it is a cheap VPU upcast of the resident weight tile.
    o_ref[...] = (
        jnp.dot(
            x_ref[...],
            w_ref[...].astype(x_ref.dtype),
            preferred_element_type=jnp.float32,
        )
        + b_ref[...]
    ).astype(o_ref.dtype)


def _linear_reduce_kernel(x_ref, w_ref, b_ref, o_ref):
    # Large-F fallback: reduce over K chunks, accumulating directly into the
    # VMEM-resident f32 output block (no separate scratch accumulator).
    k = pl.program_id(1)

    @pl.when(k == 0)
    def _():
        o_ref[...] = jnp.zeros_like(o_ref)

    o_ref[...] += jnp.dot(
        x_ref[...],
        w_ref[...].astype(x_ref.dtype),
        preferred_element_type=jnp.float32,
    )

    @pl.when(k == pl.num_programs(1) - 1)
    def _():
        o_ref[...] += b_ref[...]


# ----------------------------------------------------------------------------
# One-time parameter preparation (hoisted out of the per-call path).
# ----------------------------------------------------------------------------
def prepare_classifier_params(weight, bias, compute_dtype=jnp.bfloat16):
    """weight: (L, F) torch nn.Linear layout; bias: (L,).

    Returns (w_t, b_p, L): w_t is (F, L_pad) in compute_dtype (L padded up to
    a lane-dense multiple of 128), b_p is (1, L_pad) float32.
    """
    weight = jnp.asarray(weight)
    bias = jnp.asarray(bias, jnp.float32)
    L, F = weight.shape
    L_pad = _round_up(L, 128)
    w_t = (
        jnp.zeros((F, L_pad), compute_dtype)
        .at[:, :L]
        .set(weight.T.astype(compute_dtype))
    )
    b_p = jnp.zeros((1, L_pad), jnp.float32).at[0, :L].set(bias)
    return w_t, b_p, L


# ----------------------------------------------------------------------------
# Forward pass: y = x @ W^T + b  (applied over the last dim of x).
# ----------------------------------------------------------------------------
def classifier_forward(
    x,
    w_t,
    b_p,
    num_labels,
    *,
    tile_n=256,
    tile_k=2048,
    max_resident_weight_bytes=4 * 1024 * 1024,
):
    x = jnp.asarray(x)
    orig_shape = x.shape
    F = orig_shape[-1]
    x2 = x.reshape(-1, F)  # nn.Linear acts on the last dim
    N = x2.shape[0]
    assert w_t.shape[0] == F, "prepared weight does not match input feature dim"
    L_pad = w_t.shape[1]

    isx = jnp.dtype(x2.dtype).itemsize
    isw = jnp.dtype(w_t.dtype).itemsize

    # ---- batch (N) tiling ---------------------------------------------------
    if N <= 8:
        tn = N  # single full block, no OOB rows at all
    else:
        tn = min(tile_n, _round_up(N, 8))
    n_i = _cdiv(N, tn)
    # v7x has 2 TensorCores sharing the "parallel" axis: best effort to give
    # both cores work (>=2 tiles) and an even tile count.
    if n_i == 1 and N > 8:
        tn = _round_up(_cdiv(N, 2), 8)
        n_i = _cdiv(N, tn)
    elif n_i > 1 and n_i % 2 == 1:
        tn2 = _round_up(_cdiv(N, n_i + 1), 8)
        if _cdiv(N, tn2) % 2 == 0:
            tn = tn2
            n_i = _cdiv(N, tn2)

    weight_bytes = F * L_pad * isw
    resident_fp = (
        2 * tn * F * isx  # double-buffered x tile
        + 2 * F * L_pad * isw  # (conservatively double-buffered) weight
        + 2 * tn * L_pad * 4  # output block
        + 2 * L_pad * 4  # bias row
    )
    use_resident = (
        weight_bytes <= max_resident_weight_bytes
        and resident_fp <= 40 * 1024 * 1024
    )

    if use_resident:
        vmem_limit = min(max(resident_fp + (4 << 20), 32 << 20), 48 << 20)
        out = pl.pallas_call(
            _linear_resident_kernel,
            out_shape=jax.ShapeDtypeStruct((N, L_pad), jnp.float32),
            grid_spec=pltpu.PrefetchScalarGridSpec(
                num_scalar_prefetch=0,
                grid=(n_i,),
                in_specs=[
                    pl.BlockSpec((tn, F), lambda i: (i, 0)),        # x tile
                    pl.BlockSpec((F, L_pad), lambda i: (0, 0)),     # resident W^T
                    pl.BlockSpec((1, L_pad), lambda i: (0, 0)),     # bias row
                ],
                out_specs=pl.BlockSpec((tn, L_pad), lambda i: (i, 0)),
            ),
            compiler_params=pltpu.CompilerParams(
                dimension_semantics=("parallel",),
                vmem_limit_bytes=vmem_limit,
            ),
        )(x2, w_t, b_p)
    else:
        # Very large F: K-reduction fallback.
        tk = min(tile_k, _round_up(F, 128))
        n_k = _cdiv(F, tk)
        F_pad = n_k * tk
        if F_pad != F:
            # Only the ragged K tail is padded (rare path); garbage in a
            # partial K block would corrupt the reduction, so it must be zero.
            x2 = jnp.pad(x2, ((0, 0), (0, F_pad - F)))
            w_t = jnp.pad(w_t, ((0, F_pad - F), (0, 0)))
        reduce_fp = (
            2 * tn * tk * isx + 2 * tk * L_pad * isw + 2 * tn * L_pad * 4 + 2 * L_pad * 4
        )
        vmem_limit = min(max(reduce_fp + (4 << 20), 32 << 20), 48 << 20)
        out = pl.pallas_call(
            _linear_reduce_kernel,
            out_shape=jax.ShapeDtypeStruct((N, L_pad), jnp.float32),
            grid_spec=pltpu.PrefetchScalarGridSpec(
                num_scalar_prefetch=0,
                grid=(n_i, n_k),
                in_specs=[
                    pl.BlockSpec((tn, tk), lambda i, k: (i, k)),     # x tile
                    pl.BlockSpec((tk, L_pad), lambda i, k: (k, 0)),  # W^T tile
                    pl.BlockSpec((1, L_pad), lambda i, k: (0, 0)),   # bias row
                ],
                out_specs=pl.BlockSpec((tn, L_pad), lambda i, k: (i, 0)),
            ),
            compiler_params=pltpu.CompilerParams(
                dimension_semantics=("parallel", "arbitrary"),
                vmem_limit_bytes=vmem_limit,
            ),
        )(x2, w_t, b_p)

    logits = out[:, :num_labels]
    return logits.reshape(*orig_shape[:-1], num_labels)


# ----------------------------------------------------------------------------
# Deterministic parameter init (uniform(-1/sqrt(fan_in), 1/sqrt(fan_in))).
# ----------------------------------------------------------------------------
def init_classifier(key, hidden_dim, op_dim):
    stdv = 1.0 / math.sqrt(hidden_dim)
    kw, kb = jax.random.split(key)
    weight = jax.random.uniform(kw, (op_dim, hidden_dim), jnp.float32, -stdv, stdv)
    bias = jax.random.uniform(kb, (op_dim,), jnp.float32, -stdv, stdv)
    return weight, bias


if __name__ == "__main__":
    key = jax.random.PRNGKey(0)

    # --- Test 1: small, extra leading dims, weight-resident path -------------
    H1, L1 = 32, 5
    k_p1, k_x1, key = jax.random.split(key, 3)
    w1, b1 = init_classifier(k_p1, H1, L1)
    w_t1, b_p1, _ = prepare_classifier_params(w1, b1)
    x1 = jax.random.normal(k_x1, (2, 2, H1), jnp.float32)

    y1 = jax.jit(lambda xx: classifier_forward(xx, w_t1, b_p1, L1))(x1)
    jax.block_until_ready(y1)
    ref1 = jnp.einsum("...f,fl->...l", x1, w_t1[:, :L1].astype(jnp.float32)) + b1
    assert y1.shape == (2, 2, L1)
    assert jnp.allclose(y1, ref1, atol=2e-2, rtol=2e-2), "test1 mismatch"

    # --- Test 2: ragged N (300), resident path, f32 activations --------------
    N2, H2, L2 = 300, 256, 10
    k_p2, k_x2, key = jax.random.split(key, 3)
    w2, b2 = init_classifier(k_p2, H2, L2)
    w_t2, b_p2, _ = prepare_classifier_params(w2, b2)
    x2 = jax.random.normal(k_x2, (N2, H2), jnp.float32)

    y2 = jax.jit(lambda xx: classifier_forward(xx, w_t2, b_p2, L2))(x2)
    jax.block_until_ready(y2)
    ref2 = x2 @ w_t2[:, :L2].astype(jnp.float32) + b2
    assert y2.shape == (N2, L2)
    assert jnp.allclose(y2, ref2, atol=2e-2, rtol=2e-2), "test2 mismatch"

    # --- Test 3: forced K-reduction fallback (ragged F, multi-k) -------------
    N3, H3, L3 = 300, 400, 10
    k_p3, k_x3, key = jax.random.split(key, 3)
    w3, b3 = init_classifier(k_p3, H3, L3)
    w_t3, b_p3, _ = prepare_classifier_params(w3, b3)
    x3 = jax.random.normal(k_x3, (N3, H3), jnp.float32)

    y3 = jax.jit(
        lambda xx: classifier_forward(
            xx, w_t3, b_p3, L3, tile_k=128, max_resident_weight_bytes=0
        )
    )(x3)
    jax.block_until_ready(y3)
    ref3 = x3 @ w_t3[:, :L3].astype(jnp.float32) + b3
    assert y3.shape == (N3, L3)
    assert jnp.allclose(y3, ref3, atol=2e-2, rtol=2e-2), "test3 mismatch"

    # --- Test 4: bf16 activations (halved streaming traffic), resident path --
    x2b = x2.astype(jnp.bfloat16)
    y4 = jax.jit(lambda xx: classifier_forward(xx, w_t2, b_p2, L2))(x2b)
    jax.block_until_ready(y4)
    ref4 = x2b.astype(jnp.float32) @ w_t2[:, :L2].astype(jnp.float32) + b2
    assert y4.shape == (N2, L2)
    assert jnp.allclose(y4, ref4, atol=2e-2, rtol=2e-2), "test4 mismatch"

    print("KERNEL_OK")
</pallas_src>

<mosaic_0001>
module attributes {stable_mosaic.version = 11 : i64} {
  func.func @_linear_resident_kernel(%arg0: i32, %arg1: memref<4x32xf32, #tpu.memory_space<vmem>>, %arg2: memref<32x128xbf16, #tpu.memory_space<vmem>>, %arg3: memref<1x128xf32, #tpu.memory_space<vmem>>, %arg4: memref<4x128xf32, #tpu.memory_space<vmem>>) attributes {dimension_semantics = [#tpu.dimension_semantics<parallel>], iteration_bounds = array<i64: 1>, scalar_prefetch = 0 : i64, scratch_operands = 0 : i64, tpu.core_type = #tpu.core_type<tc>, window_params = [{transform_indices = @transform_0, window_bounds = array<i64: 4, 32>}, {pipeline_mode = #tpu.pipeline_mode<synchronous>, transform_indices = @transform_1, window_bounds = array<i64: 32, 128>}, {pipeline_mode = #tpu.pipeline_mode<synchronous>, transform_indices = @transform_2, window_bounds = array<i64: 1, 128>}, {transform_indices = @transform_3, window_bounds = array<i64: 4, 128>}]} {
    %c0 = arith.constant 0 : index
    %c0_0 = arith.constant 0 : index
    %0 = vector.load %arg1[%c0, %c0_0] : memref<4x32xf32, #tpu.memory_space<vmem>>, vector<4x32xf32>
    %c0_1 = arith.constant 0 : index
    %c0_2 = arith.constant 0 : index
    %1 = vector.load %arg2[%c0_1, %c0_2] : memref<32x128xbf16, #tpu.memory_space<vmem>>, vector<32x128xbf16>
    %2 = arith.extf %1 : vector<32x128xbf16> to vector<32x128xf32>
    %cst = arith.constant dense<0.000000e+00> : vector<4x128xf32>
    %3 = tpu.matmul %0, %2, %cst {dimension_numbers = #tpu.dot_dimension_numbers<[1], [0], [0], [1], [0, 0, 1, 1], [], []>} : vector<4x32xf32>, vector<32x128xf32>, vector<4x128xf32> -> vector<4x128xf32>
    %c0_3 = arith.constant 0 : index
    %c0_4 = arith.constant 0 : index
    %4 = vector.load %arg3[%c0_3, %c0_4] : memref<1x128xf32, #tpu.memory_space<vmem>>, vector<1x128xf32>
    %5 = vector.broadcast %4 : vector<1x128xf32> to vector<4x128xf32>
    %6 = arith.addf %3, %5 : vector<4x128xf32>
    %c0_5 = arith.constant 0 : index
    %c0_6 = arith.constant 0 : index
    %7 = vector.load %arg4[%c0_5, %c0_6] : memref<4x128xf32, #tpu.memory_space<vmem>>, vector<4x128xf32>
    tpu.vector_store %arg4[%c0_5, %c0_6], %6 {strides = array<i32>} : memref<4x128xf32, #tpu.memory_space<vmem>>, vector<4x128xf32>,
    return
  }
  func.func @transform_0(%arg0: i32) -> (i32, i32) {
    %c0_i32 = arith.constant 0 : i32
    %c0_i32_0 = arith.constant 0 : i32
    return %arg0, %c0_i32 : i32, i32
  }
  func.func @transform_1(%arg0: i32) -> (i32, i32) {
    %c0_i32 = arith.constant 0 : i32
    %c0_i32_0 = arith.constant 0 : i32
    %c0_i32_1 = arith.constant 0 : i32
    return %c0_i32, %c0_i32_0 : i32, i32
  }
  func.func @transform_2(%arg0: i32) -> (i32, i32) {
    %c0_i32 = arith.constant 0 : i32
    %c0_i32_0 = arith.constant 0 : i32
    %c0_i32_1 = arith.constant 0 : i32
    return %c0_i32, %c0_i32_0 : i32, i32
  }
  func.func @transform_3(%arg0: i32) -> (i32, i32) {
    %c0_i32 = arith.constant 0 : i32
    %c0_i32_0 = arith.constant 0 : i32
    return %arg0, %c0_i32 : i32, i32
  }
}

</mosaic_0001>

<llo_original>
// kernel: _lambda_.1
$region0: #{_lambda_.1}
  #allocation0 [shape = 'u32[]', space=smem, size = 0x4, offset = 0x4, fixed_abs, tag = 'smem constant byte address 0x4 - core index']
  #allocation1 [shape = 'u32[144,128]{1,0:T(1,128)}', space=vmem, size = 0x12000, scoped, tag = 'internal scratch']
  %s0 = inlined_call_operand.vmem [shape: f32[4,32], index: 0, kind: input, shape index: {}]
  %s1 = inlined_call_operand.hbm [shape: bf16[32,128], index: 1, kind: input, shape index: {}]
  %s2 = inlined_call_operand.vmem [shape: f32[1,128], index: 2, kind: input, shape index: {}]
  %s3 = inlined_call_operand.hbm [shape: f32[4,128], index: 3, kind: output, shape index: {}]
  %s4 = sld [smem:[#allocation0]]
  $region26: #{_lambda_.1} parent=0
    _
  %s6 = ssub.s32 1, %s4
  %s7 = scalar_select 0, %s6, %s4
  $region1: #{_lambda_.1} parent=0
    #allocation2 [shape = 'u8[8192]{0}', space=vmem, size = 0x2000, scoped, tag = 'input window, operand 1, single buffered']
    #allocation3 [shape = 's32[1]{0}', space=sflag, size = 0x4, scoped, tag = 'scoped memory for _lambda_.1']
    #allocation4 [shape = 's32[1]{0}', space=sflag, size = 0x4, scoped, tag = 'scoped memory for _lambda_.1']
    #allocation5 [shape = 'u8[2048]{0}', space=vmem, size = 0x800, scoped, tag = 'output window, operand 0, single buffered']
    %8 = vsyncpa [#allocation3], 0
    %9 = vsyncpa [#allocation4], 0
    // Predicated region
    $region2: #{_lambda_.1} parent=1 // pred_check
      _
    $region3: #{_lambda_.1} parent=1 // pred_check_branch
      %11 = sbr.rel (0) target = $region5
    $region4: #{_lambda_.1} parent=1 // pred_region
      _
    $region5: #{_lambda_.1} parent=1 // pred_fallthru
      _
    // Predicated region
    $region6: #{_lambda_.1} parent=1 // pred_check
      _
    $region7: #{_lambda_.1} parent=1 // pred_check_branch
      %13 = sbr.rel (0) target = $region9
    $region8: #{_lambda_.1} parent=1 // pred_region
      %s15 = ssub.s32 256, 256
      %16 = vsyncadd [#allocation3], %s15
      %s17 = sshll.u32 [#allocation2], 4
      %s18 = int_to_ptr.vmem [resolvable:$true] %s17
      %23 = dma.hbm_to_vmem [thread:$0]  %s1, 256, %s18, [#allocation3], 64, 64, 4
    $region9: #{_lambda_.1} parent=1 // pred_fallthru
      _
    // Predicated region
    $region10: #{_lambda_.1} parent=1 // pred_check
      _
    $region11: #{_lambda_.1} parent=1 // pred_check_branch
      %25 = sbr.rel (0) target = $region13
    $region12: #{_lambda_.1} parent=1 // pred_region
      _
    $region13: #{_lambda_.1} parent=1 // pred_fallthru
      _
    // Predicated region
    $region14: #{_lambda_.1} parent=1 // pred_check
      _
    $region15: #{_lambda_.1} parent=1 // pred_check_branch
      %27 = sbr.rel (0) target = $region17
    $region16: #{_lambda_.1} parent=1 // pred_region
      %28 = dma.done [#allocation3], 256
    $region17: #{_lambda_.1} parent=1 // pred_fallthru
      _
    %v29 = vld [vmem:[%s0] sm:$0xf]
    %v30 = vld [vmem:[#allocation2] sm:$0xf]
    %v31 = vld [vmem:[#allocation2 + $0x4] sm:$0xf]
    %v32 = vld [vmem:[#allocation2 + $0x8] sm:$0xf]
    %v33 = vld [vmem:[#allocation2 + $0xc] sm:$0xf]
    %v34 = vunpack.c.l.bf16 %v30
    %v35 = vunpack.c.l.bf16 %v31
    %v36 = vunpack.c.l.bf16 %v32
    %v37 = vunpack.c.l.bf16 %v33
    %v38 = vld [vmem:[%s2] sm:$0x1]
    %v40 = vlaneseq
    %v41 = vshrl.u32 %v40, 7
    %v42 = vsub.s32 0, %v41
    %v43 = vrot.slane %v38, %v42
    %vm45 = vcmask 261120
    %v47 = vsel %vm45, %v29, 0
    %49 = vmatprep.subr.mxu0 0.0
    %50 = vmatpush1.msra.mxu0 %v34
    %51 = vmatprep.subr.mxu0 0.0
    %52 = vmatpush1.msra.mxu0 %v35
    %53 = vmatprep.subr.mxu0 0.0
    %54 = vmatpush1.msra.mxu0 %v36
    %55 = vmatprep.subr.mxu0 0.0
    %56 = vmatpush1.msra.mxu0 %v37
    %57 = vmatprep.subr.mxu0 0.0
    %58 = vmatpush1.msra.mxu0 0.0
    %59 = vmatprep.subr.mxu0 0.0
    %60 = vmatpush1.msra.mxu0 0.0
    %61 = vmatprep.subr.mxu0 0.0
    %62 = vmatpush1.msra.mxu0 0.0
    %63 = vmatprep.subr.mxu0 0.0
    %64 = vmatpush1.msra.mxu0 0.0
    %65 = vmatprep.subr.mxu0 0.0
    %66 = vmatpush1.msra.mxu0 0.0
    %67 = vmatprep.subr.mxu0 0.0
    %68 = vmatpush1.msra.mxu0 0.0
    %69 = vmatprep.subr.mxu0 0.0
    %70 = vmatpush1.msra.mxu0 0.0
    %71 = vmatprep.subr.mxu0 0.0
    %72 = vmatpush1.msra.mxu0 0.0
    %73 = vmatprep.subr.mxu0 0.0
    %74 = vmatpush1.msra.mxu0 0.0
    %75 = vmatprep.subr.mxu0 0.0
    %76 = vmatpush1.msra.mxu0 0.0
    %77 = vmatprep.subr.mxu0 0.0
    %78 = vmatpush1.msra.mxu0 0.0
    %79 = vmatprep.subr.mxu0 0.0
    %80 = vmatpush1.msra.mxu0 0.0
    %81 = vmatprep.subr.mxu0 0.0
    %82 = vmatpush1.msra.mxu0 0.0
    %83 = vmatprep.subr.mxu0 0.0
    %84 = vmatpush1.msra.mxu0 0.0
    %85 = vmatprep.subr.mxu0 0.0
    %86 = vmatpush1.msra.mxu0 0.0
    %87 = vmatprep.subr.mxu0 0.0
    %88 = vmatpush1.msra.mxu0 0.0
    %89 = vmatprep.subr.mxu0 0.0
    %90 = vmatpush1.msra.mxu0 0.0
    %91 = vmatprep.subr.mxu0 0.0
    %92 = vmatpush1.msra.mxu0 0.0
    %93 = vmatprep.subr.mxu0 0.0
    %94 = vmatpush1.msra.mxu0 0.0
    %95 = vmatprep.subr.mxu0 0.0
    %96 = vmatpush1.msra.mxu0 0.0
    %97 = vmatprep.subr.mxu0 0.0
    %98 = vmatpush1.msra.mxu0 0.0
    %99 = vmatprep.subr.mxu0 0.0
    %100 = vmatpush1.msra.mxu0 0.0
    %101 = vmatprep.subr.mxu0 0.0
    %102 = vmatpush1.msra.mxu0 0.0
    %103 = vmatprep.subr.mxu0 0.0
    %104 = vmatpush1.msra.mxu0 0.0
    %105 = vmatprep.subr.mxu0 0.0
    %106 = vmatpush1.msra.mxu0 0.0
    %107 = vmatprep.subr.mxu0 0.0
    %108 = vmatpush1.msra.mxu0 0.0
    %109 = vmatprep.subr.mxu0 0.0
    %110 = vmatpush1.msra.mxu0 0.0
    %111 = vmatprep.subr.mxu0 0.0
    %112 = vmatpush1.msra.mxu0 0.0
    %113 = vmatprep.mubr.f32.mxu0 0.0
    %114 = vmatmul.mubr.f32.gmra.mrb[0].mxu0 %v47
    %v115 = vpop.f32.mrb[0].mxu0
    %v116 = vadd.f32 %v43, %v115
    %v117 = vpop.f32.mrb[0].mxu0
    %118 = vdwg.mxu0
    %119 = vst [vmem:[#allocation5] sm:$0xf] %v116
    // Predicated region
    $region18: #{_lambda_.1} parent=1 // pred_check
      _
    $region19: #{_lambda_.1} parent=1 // pred_check_branch
      %121 = sbr.rel (0) target = $region21
    $region20: #{_lambda_.1} parent=1 // pred_region
      %s123 = ssub.s32 64, 64
      %124 = vsyncadd [#allocation4], %s123
      %s126 = sshll.u32 [#allocation5], 4
      %s127 = int_to_ptr.vmem [resolvable:$true] %s126
      %129 = dma.vmem_to_hbm [thread:$0]  %s127, 64, %s3, [#allocation4]
    $region21: #{_lambda_.1} parent=1 // pred_fallthru
      _
    // Predicated region
    $region22: #{_lambda_.1} parent=1 // pred_check
      _
    $region23: #{_lambda_.1} parent=1 // pred_check_branch
      %131 = sbr.rel (0) target = $region25
    $region24: #{_lambda_.1} parent=1 // pred_region
      %132 = dma.done [#allocation4], 64
    $region25: #{_lambda_.1} parent=1 // pred_fallthru
      _
    %133 = vsyncpa [#allocation3], 1
    %134 = vsyncpa [#allocation4], 1

</llo_original>
